<compile_context>
chip_gen: v6e
topology: v6e:2x2x1
jax: 0.10.0
libtpu: 0.0.40
codegen_flags: <defaults>
</compile_context>

<pallas_src>
import jax
import jax.numpy as jnp
from jax.experimental import pallas as pl
from jax.experimental.pallas import tpu as pltpu


STATE_SIZE = 4      # CartPole observation dim
ACTION_SIZE = 2     # CartPole action dim
KPAD = 8            # state features zero-padded to one sublane tile
H1 = 128
H2 = 256


def _round_up(x, m):
    return -(-x // m) * m


def actor_kernel(xt_ref, w1_ref, b1_ref, w2_ref, b2_ref, w3_ref, b3_ref,
                 probs_ref):
    # Everything is transposed: batch is the lane (last) axis.
    xt = xt_ref[...]                                       # (KPAD, tb) f32

    # ---- layer 1 on the MXU (K padded 4 -> 8; f32 keeps state precision) ---
    h1 = jnp.dot(w1_ref[...], xt, preferred_element_type=jnp.float32)  # (H1, tb)
    h1 = jnp.maximum(h1 + b1_ref[...], 0.0)

    # ---- layer 2: bf16 MXU matmul, f32 accumulate / bias / relu ------------
    h2 = jnp.dot(w2_ref[...], h1.astype(jnp.bfloat16),
                 preferred_element_type=jnp.float32)       # (H2, tb)
    h2 = jnp.maximum(h2 + b2_ref[...], 0.0)

    # ---- layer 3 (+ relu on the logits, faithful to the reference) ---------
    h3 = jnp.dot(w3_ref[...], h2.astype(jnp.bfloat16),
                 preferred_element_type=jnp.float32)       # (ACTION_SIZE, tb)
    h3 = jnp.maximum(h3 + b3_ref[...], 0.0)

    # ---- softmax over the action axis --------------------------------------
    if ACTION_SIZE == 2:
        # Two-class softmax as paired row ops: no cross-lane reductions,
        # exact reciprocal so rows sum to 1 at f32 accuracy.
        r0, r1 = h3[0:1, :], h3[1:2, :]
        m = jnp.maximum(r0, r1)
        e0 = jnp.exp(r0 - m)
        e1 = jnp.exp(r1 - m)
        inv = pl.reciprocal(e0 + e1, approx=False)
        probs_ref[0:1, :] = e0 * inv
        probs_ref[1:2, :] = e1 * inv
    else:
        # General fallback: reduce over the (small) sublane axis.
        m = jnp.max(h3, axis=0, keepdims=True)
        e = jnp.exp(h3 - m)
        probs_ref[...] = e * pl.reciprocal(jnp.sum(e, axis=0, keepdims=True),
                                           approx=False)


def actor_forward(state, params, *, block_batch=256):
    """state: (B, STATE_SIZE) f32 -> action probabilities (B, ACTION_SIZE) f32.

    The Categorical distribution object itself has no tensor equivalent; we
    return its parameterization (the probabilities).
    """
    w1, b1, w2, b2, w3, b3 = params
    batch = state.shape[0]

    # Batch sits on the lane axis inside the kernel, so tiles are multiples of
    # 128.  block_batch=256 keeps per-step overhead small while letting large
    # batches produce multiple "parallel" grid steps (v7x megacore).
    padded = _round_up(batch, 128)
    tb = min(block_batch, padded)
    padded = _round_up(padded, tb)
    grid = (padded // tb,)

    # Pad features 4 -> KPAD with zeros, pad batch, transpose to lane-major.
    x = jnp.pad(state, ((0, padded - batch), (0, KPAD - STATE_SIZE)))
    xt = x.T                                               # (KPAD, padded)

    def resident(shape):
        # Constant block index -> weights/biases stay VMEM-resident across the
        # (parallel) batch grid, no per-step re-DMA.
        return pl.BlockSpec(shape, lambda i: (0, 0))

    cost = pl.CostEstimate(
        flops=2 * padded * (KPAD * H1 + H1 * H2 + H2 * ACTION_SIZE),
        transcendentals=padded * ACTION_SIZE,
        bytes_accessed=(w1.size * 4 + (w2.size + w3.size) * 2
                        + (b1.size + b2.size + b3.size) * 4
                        + padded * (KPAD + ACTION_SIZE) * 4),
    )

    probs_t = pl.pallas_call(
        actor_kernel,
        out_shape=jax.ShapeDtypeStruct((ACTION_SIZE, padded), jnp.float32),
        grid_spec=pltpu.PrefetchScalarGridSpec(
            num_scalar_prefetch=0,
            grid=grid,
            in_specs=[
                pl.BlockSpec((KPAD, tb), lambda i: (0, i)),   # x^T tile
                resident((H1, KPAD)),                         # w1 (f32)
                resident((H1, 1)),                            # b1
                resident((H2, H1)),                           # w2 (bf16)
                resident((H2, 1)),                            # b2
                resident((ACTION_SIZE, H2)),                  # w3 (bf16)
                resident((ACTION_SIZE, 1)),                   # b3
            ],
            out_specs=pl.BlockSpec((ACTION_SIZE, tb), lambda i: (0, i)),
        ),
        compiler_params=pltpu.CompilerParams(
            dimension_semantics=("parallel",)),
        cost_estimate=cost,
    )(xt, w1, b1, w2, b2, w3, b3)

    return probs_t[:, :batch].T                            # (B, ACTION_SIZE)


def init_params(key):
    """Deterministic synthetic parameters (uniform, roughly torch-Linear scale).

    Weights are stored in torch layout (out_features, in_features), which is
    exactly what the transposed (batch-on-lanes) kernel consumes.  w2/w3 are
    bf16 (half DMA, 2x MXU rate); w1 stays f32 (tiny) with its input dim
    zero-padded 4 -> KPAD; biases are f32 (out, 1) columns.
    """
    ks = jax.random.split(key, 6)

    def lin(kw, kb, fan_in, fan_out, pad_in=None, wdtype=jnp.bfloat16):
        bound = 1.0 / jnp.sqrt(jnp.float32(fan_in))
        w = jax.random.uniform(kw, (fan_out, fan_in), jnp.float32, -bound, bound)
        if pad_in is not None and pad_in > fan_in:
            w = jnp.pad(w, ((0, 0), (0, pad_in - fan_in)))
        b = jax.random.uniform(kb, (fan_out, 1), jnp.float32, -bound, bound)
        return w.astype(wdtype), b

    w1, b1 = lin(ks[0], ks[1], STATE_SIZE, H1, pad_in=KPAD, wdtype=jnp.float32)
    w2, b2 = lin(ks[2], ks[3], H1, H2)
    w3, b3 = lin(ks[4], ks[5], H2, ACTION_SIZE)
    return (w1, b1, w2, b2, w3, b3)


def actor_reference(state, params):
    """Pure-JAX reference (same bf16 w2/w3 weights, f32 math)."""
    w1, b1, w2, b2, w3, b3 = params
    x = jnp.pad(state, ((0, 0), (0, KPAD - STATE_SIZE)))
    h1 = jnp.maximum(x @ w1.T + b1.T, 0.0)
    h2 = jnp.maximum(h1 @ w2.astype(jnp.float32).T + b2.T, 0.0)
    h3 = jnp.maximum(h2 @ w3.astype(jnp.float32).T + b3.T, 0.0)
    return jax.nn.softmax(h3, axis=-1)


if __name__ == "__main__":
    key = jax.random.PRNGKey(0)
    k_state, k_params = jax.random.split(key)

    batch = 8
    state = jax.random.normal(k_state, (batch, STATE_SIZE), jnp.float32)
    params = init_params(k_params)

    probs = actor_forward(state, params)
    probs = jax.block_until_ready(probs)

    # sanity: rows of a Categorical parameterization must sum to 1
    assert probs.shape == (batch, ACTION_SIZE)
    row_sums = jnp.sum(probs, axis=-1)
    assert bool(jnp.all(jnp.abs(row_sums - 1.0) < 1e-3))

    # parity with the pure-JAX reference (bf16 matmul inputs -> 1e-2 tol)
    ref = actor_reference(state, params)
    assert bool(jnp.all(jnp.abs(probs - ref) < 1e-2))

    # TODO(synk): torch.distributions.Categorical (sampling / log_prob) has no
    # tensor-op equivalent here; the kernel returns its probability parameters.
    print("KERNEL_OK")
</pallas_src>

<mosaic_0001>
module attributes {stable_mosaic.version = 11 : i64} {
  func.func @actor_kernel(%arg0: i32, %arg1: memref<8x128xf32, #tpu.memory_space<vmem>>, %arg2: memref<128x8xf32, #tpu.memory_space<vmem>>, %arg3: memref<128x1xf32, #tpu.memory_space<vmem>>, %arg4: memref<256x128xbf16, #tpu.memory_space<vmem>>, %arg5: memref<256x1xf32, #tpu.memory_space<vmem>>, %arg6: memref<2x256xbf16, #tpu.memory_space<vmem>>, %arg7: memref<2x1xf32, #tpu.memory_space<vmem>>, %arg8: memref<2x128xf32, #tpu.memory_space<vmem>>) attributes {dimension_semantics = [#tpu.dimension_semantics<parallel>], iteration_bounds = array<i64: 1>, scalar_prefetch = 0 : i64, scratch_operands = 0 : i64, tpu.core_type = #tpu.core_type<tc>, window_params = [{transform_indices = @transform_0, window_bounds = array<i64: 8, 128>}, {pipeline_mode = #tpu.pipeline_mode<synchronous>, transform_indices = @transform_1, window_bounds = array<i64: 128, 8>}, {pipeline_mode = #tpu.pipeline_mode<synchronous>, transform_indices = @transform_2, window_bounds = array<i64: 128, 1>}, {pipeline_mode = #tpu.pipeline_mode<synchronous>, transform_indices = @transform_3, window_bounds = array<i64: 256, 128>}, {pipeline_mode = #tpu.pipeline_mode<synchronous>, transform_indices = @transform_4, window_bounds = array<i64: 256, 1>}, {pipeline_mode = #tpu.pipeline_mode<synchronous>, transform_indices = @transform_5, window_bounds = array<i64: 2, 256>}, {pipeline_mode = #tpu.pipeline_mode<synchronous>, transform_indices = @transform_6, window_bounds = array<i64: 2, 1>}, {transform_indices = @transform_7, window_bounds = array<i64: 2, 128>}]} {
    %c0 = arith.constant 0 : index
    %c0_0 = arith.constant 0 : index
    %0 = vector.load %arg1[%c0, %c0_0] : memref<8x128xf32, #tpu.memory_space<vmem>>, vector<8x128xf32>
    %c0_1 = arith.constant 0 : index
    %c0_2 = arith.constant 0 : index
    %1 = vector.load %arg2[%c0_1, %c0_2] : memref<128x8xf32, #tpu.memory_space<vmem>>, vector<128x8xf32>
    %cst = arith.constant dense<0.000000e+00> : vector<128x128xf32>
    %2 = tpu.matmul %1, %0, %cst {dimension_numbers = #tpu.dot_dimension_numbers<[1], [0], [0], [1], [0, 0, 1, 1], [], []>} : vector<128x8xf32>, vector<8x128xf32>, vector<128x128xf32> -> vector<128x128xf32>
    %c0_3 = arith.constant 0 : index
    %c0_4 = arith.constant 0 : index
    %3 = vector.load %arg3[%c0_3, %c0_4] : memref<128x1xf32, #tpu.memory_space<vmem>>, vector<128x1xf32>
    %4 = vector.broadcast %3 : vector<128x1xf32> to vector<128x128xf32>
    %5 = arith.addf %2, %4 : vector<128x128xf32>
    %cst_5 = arith.constant 0.000000e+00 : f32
    %6 = vector.broadcast %cst_5 : f32 to vector<128x128xf32>
    %7 = arith.maximumf %5, %6 : vector<128x128xf32>
    %c0_6 = arith.constant 0 : index
    %c0_7 = arith.constant 0 : index
    %8 = vector.load %arg4[%c0_6, %c0_7] : memref<256x128xbf16, #tpu.memory_space<vmem>>, vector<256x128xbf16>
    %9 = arith.truncf %7 : vector<128x128xf32> to vector<128x128xbf16>
    %cst_8 = arith.constant dense<0.000000e+00> : vector<256x128xf32>
    %10 = tpu.matmul %8, %9, %cst_8 {dimension_numbers = #tpu.dot_dimension_numbers<[1], [0], [0], [1], [0, 0, 1, 1], [], []>} : vector<256x128xbf16>, vector<128x128xbf16>, vector<256x128xf32> -> vector<256x128xf32>
    %c0_9 = arith.constant 0 : index
    %c0_10 = arith.constant 0 : index
    %11 = vector.load %arg5[%c0_9, %c0_10] : memref<256x1xf32, #tpu.memory_space<vmem>>, vector<256x1xf32>
    %12 = vector.broadcast %11 : vector<256x1xf32> to vector<256x128xf32>
    %13 = arith.addf %10, %12 : vector<256x128xf32>
    %cst_11 = arith.constant 0.000000e+00 : f32
    %14 = vector.broadcast %cst_11 : f32 to vector<256x128xf32>
    %15 = arith.maximumf %13, %14 : vector<256x128xf32>
    %c0_12 = arith.constant 0 : index
    %c0_13 = arith.constant 0 : index
    %16 = vector.load %arg6[%c0_12, %c0_13] : memref<2x256xbf16, #tpu.memory_space<vmem>>, vector<2x256xbf16>
    %17 = arith.truncf %15 : vector<256x128xf32> to vector<256x128xbf16>
    %cst_14 = arith.constant dense<0.000000e+00> : vector<2x128xf32>
    %18 = tpu.matmul %16, %17, %cst_14 {dimension_numbers = #tpu.dot_dimension_numbers<[1], [0], [0], [1], [0, 0, 1, 1], [], []>} : vector<2x256xbf16>, vector<256x128xbf16>, vector<2x128xf32> -> vector<2x128xf32>
    %c0_15 = arith.constant 0 : index
    %c0_16 = arith.constant 0 : index
    %19 = vector.load %arg7[%c0_15, %c0_16] : memref<2x1xf32, #tpu.memory_space<vmem>>, vector<2x1xf32>
    %20 = vector.broadcast %19 : vector<2x1xf32> to vector<2x128xf32>
    %21 = arith.addf %18, %20 : vector<2x128xf32>
    %cst_17 = arith.constant 0.000000e+00 : f32
    %22 = vector.broadcast %cst_17 : f32 to vector<2x128xf32>
    %23 = arith.maximumf %21, %22 : vector<2x128xf32>
    %24 = vector.extract_strided_slice %23 {offsets = [0, 0], sizes = [1, 128], strides = [1, 1]} : vector<2x128xf32> to vector<1x128xf32>
    %25 = vector.extract_strided_slice %23 {offsets = [1, 0], sizes = [1, 128], strides = [1, 1]} : vector<2x128xf32> to vector<1x128xf32>
    %26 = arith.maximumf %24, %25 : vector<1x128xf32>
    %27 = arith.subf %24, %26 : vector<1x128xf32>
    %28 = math.exp %27 : vector<1x128xf32>
    %29 = arith.subf %25, %26 : vector<1x128xf32>
    %30 = math.exp %29 : vector<1x128xf32>
    %31 = arith.addf %28, %30 : vector<1x128xf32>
    %32 = tpu.reciprocal %31 : vector<1x128xf32> -> vector<1x128xf32>
    %33 = arith.mulf %28, %32 : vector<1x128xf32>
    %c0_18 = arith.constant 0 : index
    %c0_19 = arith.constant 0 : index
    %34 = vector.load %arg8[%c0_18, %c0_19] : memref<2x128xf32, #tpu.memory_space<vmem>>, vector<1x128xf32>
    tpu.vector_store %arg8[%c0_18, %c0_19], %33 {strides = array<i32>} : memref<2x128xf32, #tpu.memory_space<vmem>>, vector<1x128xf32>,
    %35 = arith.mulf %30, %32 : vector<1x128xf32>
    %c1 = arith.constant 1 : index
    %c0_20 = arith.constant 0 : index
    %36 = vector.load %arg8[%c1, %c0_20] : memref<2x128xf32, #tpu.memory_space<vmem>>, vector<1x128xf32>
    tpu.vector_store %arg8[%c1, %c0_20], %35 {strides = array<i32>} : memref<2x128xf32, #tpu.memory_space<vmem>>, vector<1x128xf32>,
    return
  }
  func.func @transform_0(%arg0: i32) -> (i32, i32) {
    %c0_i32 = arith.constant 0 : i32
    %c0_i32_0 = arith.constant 0 : i32
    return %c0_i32, %arg0 : i32, i32
  }
  func.func @transform_1(%arg0: i32) -> (i32, i32) {
    %c0_i32 = arith.constant 0 : i32
    %c0_i32_0 = arith.constant 0 : i32
    %c0_i32_1 = arith.constant 0 : i32
    return %c0_i32, %c0_i32_0 : i32, i32
  }
  func.func @transform_2(%arg0: i32) -> (i32, i32) {
    %c0_i32 = arith.constant 0 : i32
    %c0_i32_0 = arith.constant 0 : i32
    %c0_i32_1 = arith.constant 0 : i32
    return %c0_i32, %c0_i32_0 : i32, i32
  }
  func.func @transform_3(%arg0: i32) -> (i32, i32) {
    %c0_i32 = arith.constant 0 : i32
    %c0_i32_0 = arith.constant 0 : i32
    %c0_i32_1 = arith.constant 0 : i32
    return %c0_i32, %c0_i32_0 : i32, i32
  }
  func.func @transform_4(%arg0: i32) -> (i32, i32) {
    %c0_i32 = arith.constant 0 : i32
    %c0_i32_0 = arith.constant 0 : i32
    %c0_i32_1 = arith.constant 0 : i32
    return %c0_i32, %c0_i32_0 : i32, i32
  }
  func.func @transform_5(%arg0: i32) -> (i32, i32) {
    %c0_i32 = arith.constant 0 : i32
    %c0_i32_0 = arith.constant 0 : i32
    %c0_i32_1 = arith.constant 0 : i32
    return %c0_i32, %c0_i32_0 : i32, i32
  }
  func.func @transform_6(%arg0: i32) -> (i32, i32) {
    %c0_i32 = arith.constant 0 : i32
    %c0_i32_0 = arith.constant 0 : i32
    %c0_i32_1 = arith.constant 0 : i32
    return %c0_i32, %c0_i32_0 : i32, i32
  }
  func.func @transform_7(%arg0: i32) -> (i32, i32) {
    %c0_i32 = arith.constant 0 : i32
    %c0_i32_0 = arith.constant 0 : i32
    return %c0_i32, %arg0 : i32, i32
  }
}

</mosaic_0001>

<llo_original>
// kernel: tpu_custom_call.1
$region0: #{tpu_custom_call.1}
  #allocation0 [shape = 'u32[]', space=smem, size = 0x4, offset = 0x4, fixed_abs, tag = 'smem constant byte address 0x4 - core index']
  #allocation1 [shape = 'u32[144,128]{1,0:T(1,128)}', space=vmem, size = 0x12000, scoped, tag = 'internal scratch']
  %s0 = inlined_call_operand.vmem [shape: f32[8,128], index: 0, kind: input, shape index: {}]
  %s1 = inlined_call_operand.vmem [shape: f32[128,8], index: 1, kind: input, shape index: {}]
  %s2 = inlined_call_operand.vmem [shape: f32[128,1], index: 2, kind: input, shape index: {}]
  %s3 = inlined_call_operand.vmem [shape: bf16[256,128], index: 3, kind: input, shape index: {}]
  %s4 = inlined_call_operand.vmem [shape: f32[256,1], index: 4, kind: input, shape index: {}]
  %s5 = inlined_call_operand.vmem [shape: bf16[2,256], index: 5, kind: input, shape index: {}]
  %s6 = inlined_call_operand.vmem [shape: f32[2,1], index: 6, kind: input, shape index: {}]
  %s7 = inlined_call_operand.hbm [shape: f32[2,128], index: 7, kind: output, shape index: {}]
  %s8 = sld [smem:[#allocation0]]
  $region38: #{tpu_custom_call.1} parent=0
    _
  %s10 = ssub.s32 1, %s8
  %s11 = scalar_select 0, %s10, %s8
  $region1: #{tpu_custom_call.1} parent=0
    #allocation2 [shape = 'u8[1024]{0}', space=vmem, size = 0x400, scoped, tag = 'output window, operand 0, single buffered']
    #allocation3 [shape = 's32[1]{0}', space=sflag, size = 0x4, scoped, tag = 'scoped memory for tpu_custom_call.1']
    %12 = vsyncpa [#allocation3], 0
    // Predicated region
    $region2: #{tpu_custom_call.1} parent=1 // pred_check
      _
    $region3: #{tpu_custom_call.1} parent=1 // pred_check_branch
      %14 = sbr.rel (0) target = $region5
    $region4: #{tpu_custom_call.1} parent=1 // pred_region
      _
    $region5: #{tpu_custom_call.1} parent=1 // pred_fallthru
      _
    // Predicated region
    $region6: #{tpu_custom_call.1} parent=1 // pred_check
      _
    $region7: #{tpu_custom_call.1} parent=1 // pred_check_branch
      %16 = sbr.rel (0) target = $region9
    $region8: #{tpu_custom_call.1} parent=1 // pred_region
      _
    $region9: #{tpu_custom_call.1} parent=1 // pred_fallthru
      _
    // Predicated region
    $region10: #{tpu_custom_call.1} parent=1 // pred_check
      _
    $region11: #{tpu_custom_call.1} parent=1 // pred_check_branch
      %18 = sbr.rel (0) target = $region13
    $region12: #{tpu_custom_call.1} parent=1 // pred_region
      _
    $region13: #{tpu_custom_call.1} parent=1 // pred_fallthru
      _
    // Predicated region
    $region14: #{tpu_custom_call.1} parent=1 // pred_check
      _
    $region15: #{tpu_custom_call.1} parent=1 // pred_check_branch
      %20 = sbr.rel (0) target = $region17
    $region16: #{tpu_custom_call.1} parent=1 // pred_region
      _
    $region17: #{tpu_custom_call.1} parent=1 // pred_fallthru
      _
    // Predicated region
    $region18: #{tpu_custom_call.1} parent=1 // pred_check
      _
    $region19: #{tpu_custom_call.1} parent=1 // pred_check_branch
      %22 = sbr.rel (0) target = $region21
    $region20: #{tpu_custom_call.1} parent=1 // pred_region
      _
    $region21: #{tpu_custom_call.1} parent=1 // pred_fallthru
      _
    // Predicated region
    $region22: #{tpu_custom_call.1} parent=1 // pred_check
      _
    $region23: #{tpu_custom_call.1} parent=1 // pred_check_branch
      %24 = sbr.rel (0) target = $region25
    $region24: #{tpu_custom_call.1} parent=1 // pred_region
      _
    $region25: #{tpu_custom_call.1} parent=1 // pred_fallthru
      _
    // Predicated region
    $region26: #{tpu_custom_call.1} parent=1 // pred_check
      _
    $region27: #{tpu_custom_call.1} parent=1 // pred_check_branch
      %26 = sbr.rel (0) target = $region29
    $region28: #{tpu_custom_call.1} parent=1 // pred_region
      _
    $region29: #{tpu_custom_call.1} parent=1 // pred_fallthru
      _
    %v28 = vld [vmem:[%s0] sm:$0xff]
    %v29 = vld [vmem:[%s1] sm:$0xff]
    %v30 = vld [vmem:[%s1 + $0x8] sm:$0xff]
    %v31 = vld [vmem:[%s1 + $0x10] sm:$0xff]
    %v32 = vld [vmem:[%s1 + $0x18] sm:$0xff]
    %v33 = vld [vmem:[%s1 + $0x20] sm:$0xff]
    %v34 = vld [vmem:[%s1 + $0x28] sm:$0xff]
    %v35 = vld [vmem:[%s1 + $0x30] sm:$0xff]
    %v36 = vld [vmem:[%s1 + $0x38] sm:$0xff]
    %v37 = vld [vmem:[%s1 + $0x40] sm:$0xff]
    %v38 = vld [vmem:[%s1 + $0x48] sm:$0xff]
    %v39 = vld [vmem:[%s1 + $0x50] sm:$0xff]
    %v40 = vld [vmem:[%s1 + $0x58] sm:$0xff]
    %v41 = vld [vmem:[%s1 + $0x60] sm:$0xff]
    %v42 = vld [vmem:[%s1 + $0x68] sm:$0xff]
    %v43 = vld [vmem:[%s1 + $0x70] sm:$0xff]
    %v44 = vld [vmem:[%s1 + $0x78] sm:$0xff]
    %v45 = vld [vmem:[%s2] sm:$0xff]
    %v46 = vld [vmem:[%s2 + $0x8] sm:$0xff]
    %v47 = vld [vmem:[%s2 + $0x10] sm:$0xff]
    %v48 = vld [vmem:[%s2 + $0x18] sm:$0xff]
    %v49 = vld [vmem:[%s2 + $0x20] sm:$0xff]
    %v50 = vld [vmem:[%s2 + $0x28] sm:$0xff]
    %v51 = vld [vmem:[%s2 + $0x30] sm:$0xff]
    %v52 = vld [vmem:[%s2 + $0x38] sm:$0xff]
    %v53 = vld [vmem:[%s2 + $0x40] sm:$0xff]
    %v54 = vld [vmem:[%s2 + $0x48] sm:$0xff]
    %v55 = vld [vmem:[%s2 + $0x50] sm:$0xff]
    %v56 = vld [vmem:[%s2 + $0x58] sm:$0xff]
    %v57 = vld [vmem:[%s2 + $0x60] sm:$0xff]
    %v58 = vld [vmem:[%s2 + $0x68] sm:$0xff]
    %v59 = vld [vmem:[%s2 + $0x70] sm:$0xff]
    %v60 = vld [vmem:[%s2 + $0x78] sm:$0xff]
    %62 = vset.pattern.permute.xlu0 0
    %63 = vperm.xlu0 %62, %v45
    %v64 = vpop.permute.xlu0 %63
    %67 = vset.pattern.permute.xlu0 0
    %68 = vperm.xlu0 %67, %v46
    %v69 = vpop.permute.xlu0 %68
    %72 = vset.pattern.permute.xlu0 0
    %73 = vperm.xlu0 %72, %v47
    %v74 = vpop.permute.xlu0 %73
    %77 = vset.pattern.permute.xlu0 0
    %78 = vperm.xlu0 %77, %v48
    %v79 = vpop.permute.xlu0 %78
    %82 = vset.pattern.permute.xlu0 0
    %83 = vperm.xlu0 %82, %v49
    %v84 = vpop.permute.xlu0 %83
    %87 = vset.pattern.permute.xlu0 0
    %88 = vperm.xlu0 %87, %v50
    %v89 = vpop.permute.xlu0 %88
    %92 = vset.pattern.permute.xlu0 0
    %93 = vperm.xlu0 %92, %v51
    %v94 = vpop.permute.xlu0 %93
    %97 = vset.pattern.permute.xlu0 0
    %98 = vperm.xlu0 %97, %v52
    %v99 = vpop.permute.xlu0 %98
    %102 = vset.pattern.permute.xlu0 0
    %103 = vperm.xlu0 %102, %v53
    %v104 = vpop.permute.xlu0 %103
    %107 = vset.pattern.permute.xlu0 0
    %108 = vperm.xlu0 %107, %v54
    %v109 = vpop.permute.xlu0 %108
    %112 = vset.pattern.permute.xlu0 0
    %113 = vperm.xlu0 %112, %v55
    %v114 = vpop.permute.xlu0 %113
    %117 = vset.pattern.permute.xlu0 0
    %118 = vperm.xlu0 %117, %v56
    %v119 = vpop.permute.xlu0 %118
    %122 = vset.pattern.permute.xlu0 0
    %123 = vperm.xlu0 %122, %v57
    %v124 = vpop.permute.xlu0 %123
    %127 = vset.pattern.permute.xlu0 0
    %128 = vperm.xlu0 %127, %v58
    %v129 = vpop.permute.xlu0 %128
    %132 = vset.pattern.permute.xlu0 0
    %133 = vperm.xlu0 %132, %v59
    %v134 = vpop.permute.xlu0 %133
    %137 = vset.pattern.permute.xlu0 0
    %138 = vperm.xlu0 %137, %v60
    %v139 = vpop.permute.xlu0 %138
    %vm141 = vcmask 64512
    %v143 = vsel %vm141, %v29, 0
    %v146 = vsel %vm141, %v30, 0
    %v149 = vsel %vm141, %v31, 0
    %v152 = vsel %vm141, %v32, 0
    %v155 = vsel %vm141, %v33, 0
    %v158 = vsel %vm141, %v34, 0
    %v161 = vsel %vm141, %v35, 0
    %v164 = vsel %vm141, %v36, 0
    %v167 = vsel %vm141, %v37, 0
    %v170 = vsel %vm141, %v38, 0
    %v173 = vsel %vm141, %v39, 0
    %v176 = vsel %vm141, %v40, 0
    %v179 = vsel %vm141, %v41, 0
    %v182 = vsel %vm141, %v42, 0
    %v185 = vsel %vm141, %v43, 0
    %v188 = vsel %vm141, %v44, 0
    %190 = vmatprep.subr.mxu0 0.0
    %191 = vmatpush1.msra.mxu0 0.0
    %192 = vmatprep.subr.mxu0 0.0
    %193 = vmatpush1.msra.mxu0 0.0
    %194 = vmatprep.subr.mxu0 0.0
    %195 = vmatpush1.msra.mxu0 0.0
    %196 = vmatprep.subr.mxu0 0.0
    %197 = vmatpush1.msra.mxu0 0.0
    %198 = vmatprep.subr.mxu0 0.0
    %199 = vmatpush1.msra.mxu0 0.0
    %200 = vmatprep.subr.mxu0 0.0
    %201 = vmatpush1.msra.mxu0 0.0
    %202 = vmatprep.subr.mxu0 0.0
    %203 = vmatpush1.msra.mxu0 0.0
    %204 = vmatprep.subr.mxu0 0.0
    %205 = vmatpush1.msra.mxu0 0.0
    %206 = vmatprep.subr.mxu0 0.0
    %207 = vmatpush1.msra.mxu0 0.0
    %208 = vmatprep.subr.mxu0 0.0
    %209 = vmatpush1.msra.mxu0 0.0
    %210 = vmatprep.subr.mxu0 0.0
    %211 = vmatpush1.msra.mxu0 0.0
    %212 = vmatprep.subr.mxu0 0.0
    %213 = vmatpush1.msra.mxu0 0.0
    %214 = vmatprep.subr.mxu0 0.0
    %215 = vmatpush1.msra.mxu0 0.0
    %216 = vmatprep.subr.mxu0 0.0
    %217 = vmatpush1.msra.mxu0 0.0
    %218 = vmatprep.subr.mxu0 0.0
    %219 = vmatpush1.msra.mxu0 0.0
    %220 = vmatprep.subr.mxu0 0.0
    %221 = vmatpush1.msra.mxu0 %v28
    %222 = vmatprep.subr.mxu0 0.0
    %223 = vmatpush2.msra.mxu0 0.0
    %224 = vmatprep.subr.mxu0 0.0
    %225 = vmatpush2.msra.mxu0 0.0
    %226 = vmatprep.subr.mxu0 0.0
    %227 = vmatpush2.msra.mxu0 0.0
    %228 = vmatprep.subr.mxu0 0.0
    %229 = vmatpush2.msra.mxu0 0.0
    %230 = vmatprep.subr.mxu0 0.0
    %231 = vmatpush2.msra.mxu0 0.0
    %232 = vmatprep.subr.mxu0 0.0
    %233 = vmatpush2.msra.mxu0 0.0
    %234 = vmatprep.subr.mxu0 0.0
    %235 = vmatpush2.msra.mxu0 0.0
    %236 = vmatprep.subr.mxu0 0.0
    %237 = vmatpush2.msra.mxu0 0.0
    %238 = vmatprep.subr.mxu0 0.0
    %239 = vmatpush2.msra.mxu0 0.0
    %240 = vmatprep.subr.mxu0 0.0
    %241 = vmatpush2.msra.mxu0 0.0
    %242 = vmatprep.subr.mxu0 0.0
    %243 = vmatpush2.msra.mxu0 0.0
    %244 = vmatprep.subr.mxu0 0.0
    %245 = vmatpush2.msra.mxu0 0.0
    %246 = vmatprep.subr.mxu0 0.0
    %247 = vmatpush2.msra.mxu0 0.0
    %248 = vmatprep.subr.mxu0 0.0
    %249 = vmatpush2.msra.mxu0 0.0
    %250 = vmatprep.subr.mxu0 0.0
    %251 = vmatpush2.msra.mxu0 0.0
    %252 = vmatprep.subr.mxu0 0.0
    %253 = vmatpush2.msra.mxu0 0.0
    %254 = vmatprep.mubr.f32.mxu0 0.0
    %255 = vmatmul.mubr.f32.gmra.mxu0 %v143
    %v256 = vpop.f32.mrf.mxu0
    %v257 = vadd.f32 %v64, %v256
    %v258 = vpop.f32.mrf.mxu0
    %259 = vmatprep.mubr.f32.mxu0 0.0
    %260 = vmatmul.mubr.f32.gmra.mxu0 %v146
    %v261 = vpop.f32.mrf.mxu0
    %v262 = vadd.f32 %v69, %v261
    %v263 = vpop.f32.mrf.mxu0
    %264 = vmatprep.mubr.f32.mxu0 0.0
    %265 = vmatmul.mubr.f32.gmra.mxu0 %v149
    %v266 = vpop.f32.mrf.mxu0
    %v267 = vadd.f32 %v74, %v266
    %v268 = vpop.f32.mrf.mxu0
    %269 = vmatprep.mubr.f32.mxu0 0.0
    %270 = vmatmul.mubr.f32.gmra.mxu0 %v152
    %v271 = vpop.f32.mrf.mxu0
    %v272 = vadd.f32 %v79, %v271
    %v273 = vpop.f32.mrf.mxu0
    %274 = vmatprep.mubr.f32.mxu0 0.0
    %275 = vmatmul.mubr.f32.gmra.mxu0 %v155
    %v276 = vpop.f32.mrf.mxu0
    %v277 = vadd.f32 %v84, %v276
    %v278 = vpop.f32.mrf.mxu0
    %279 = vmatprep.mubr.f32.mxu0 0.0
    %280 = vmatmul.mubr.f32.gmra.mxu0 %v158
    %v281 = vpop.f32.mrf.mxu0
    %v282 = vadd.f32 %v89, %v281
    %v283 = vpop.f32.mrf.mxu0
    %284 = vmatprep.mubr.f32.mxu0 0.0
    %285 = vmatmul.mubr.f32.gmra.mxu0 %v161
    %v286 = vpop.f32.mrf.mxu0
    %v287 = vadd.f32 %v94, %v286
    %v288 = vpop.f32.mrf.mxu0
    %289 = vmatprep.mubr.f32.mxu0 0.0
    %290 = vmatmul.mubr.f32.gmra.mxu0 %v164
    %v291 = vpop.f32.mrf.mxu0
    %v292 = vadd.f32 %v99, %v291
    %v293 = vpop.f32.mrf.mxu0
    %294 = vmatprep.mubr.f32.mxu0 0.0
    %295 = vmatmul.mubr.f32.gmra.mxu0 %v167
    %v296 = vpop.f32.mrf.mxu0
    %v297 = vadd.f32 %v104, %v296
    %v298 = vpop.f32.mrf.mxu0
    %299 = vmatprep.mubr.f32.mxu0 0.0
    %300 = vmatmul.mubr.f32.gmra.mxu0 %v170
    %v301 = vpop.f32.mrf.mxu0
    %v302 = vadd.f32 %v109, %v301
    %v303 = vpop.f32.mrf.mxu0
    %304 = vmatprep.mubr.f32.mxu0 0.0
    %305 = vmatmul.mubr.f32.gmra.mxu0 %v173
    %v306 = vpop.f32.mrf.mxu0
    %v307 = vadd.f32 %v114, %v306
    %v308 = vpop.f32.mrf.mxu0
    %309 = vmatprep.mubr.f32.mxu0 0.0
    %310 = vmatmul.mubr.f32.gmra.mxu0 %v176
    %v311 = vpop.f32.mrf.mxu0
    %v312 = vadd.f32 %v119, %v311
    %v313 = vpop.f32.mrf.mxu0
    %314 = vmatprep.mubr.f32.mxu0 0.0
    %315 = vmatmul.mubr.f32.gmra.mxu0 %v179
    %v316 = vpop.f32.mrf.mxu0
    %v317 = vadd.f32 %v124, %v316
    %v318 = vpop.f32.mrf.mxu0
    %319 = vmatprep.mubr.f32.mxu0 0.0
    %320 = vmatmul.mubr.f32.gmra.mxu0 %v182
    %v321 = vpop.f32.mrf.mxu0
    %v322 = vadd.f32 %v129, %v321
    %v323 = vpop.f32.mrf.mxu0
    %324 = vmatprep.mubr.f32.mxu0 0.0
    %325 = vmatmul.mubr.f32.gmra.mxu0 %v185
    %v326 = vpop.f32.mrf.mxu0
    %v327 = vadd.f32 %v134, %v326
    %v328 = vpop.f32.mrf.mxu0
    %329 = vmatprep.mubr.f32.mxu0 0.0
    %330 = vmatmul.mubr.f32.gmra.mxu0 %v188
    %v331 = vpop.f32.mrf.mxu0
    %v332 = vadd.f32 %v139, %v331
    %v333 = vpop.f32.mrf.mxu0
    %334 = vdwg.mxu0
    %v335 = vmax.f32 %v257, 0.0
    %v336 = vmax.f32 %v262, 0.0
    %v337 = vmax.f32 %v267, 0.0
    %v338 = vmax.f32 %v272, 0.0
    %v339 = vmax.f32 %v277, 0.0
    %v340 = vmax.f32 %v282, 0.0
    %v341 = vmax.f32 %v287, 0.0
    %v342 = vmax.f32 %v292, 0.0
    %v343 = vmax.f32 %v297, 0.0
    %v344 = vmax.f32 %v302, 0.0
    %v345 = vmax.f32 %v307, 0.0
    %v346 = vmax.f32 %v312, 0.0
    %v347 = vmax.f32 %v317, 0.0
    %v348 = vmax.f32 %v322, 0.0
    %v349 = vmax.f32 %v327, 0.0
    %v350 = vmax.f32 %v332, 0.0
    %v351 = vld [vmem:[%s3] sm:$0xf]
    %v352 = vld [vmem:[%s3 + $0x4] sm:$0xf]
    %v353 = vld [vmem:[%s3 + $0x8] sm:$0xf]
    %v354 = vld [vmem:[%s3 + $0xc] sm:$0xf]
    %v355 = vld [vmem:[%s3 + $0x10] sm:$0xf]
    %v356 = vld [vmem:[%s3 + $0x14] sm:$0xf]
    %v357 = vld [vmem:[%s3 + $0x18] sm:$0xf]
    %v358 = vld [vmem:[%s3 + $0x1c] sm:$0xf]
    %v359 = vld [vmem:[%s3 + $0x20] sm:$0xf]
    %v360 = vld [vmem:[%s3 + $0x24] sm:$0xf]
    %v361 = vld [vmem:[%s3 + $0x28] sm:$0xf]
    %v362 = vld [vmem:[%s3 + $0x2c] sm:$0xf]
    %v363 = vld [vmem:[%s3 + $0x30] sm:$0xf]
    %v364 = vld [vmem:[%s3 + $0x34] sm:$0xf]
    %v365 = vld [vmem:[%s3 + $0x38] sm:$0xf]
    %v366 = vld [vmem:[%s3 + $0x3c] sm:$0xf]
    %v367 = vld [vmem:[%s3 + $0x40] sm:$0xf]
    %v368 = vld [vmem:[%s3 + $0x44] sm:$0xf]
    %v369 = vld [vmem:[%s3 + $0x48] sm:$0xf]
    %v370 = vld [vmem:[%s3 + $0x4c] sm:$0xf]
    %v371 = vld [vmem:[%s3 + $0x50] sm:$0xf]
    %v372 = vld [vmem:[%s3 + $0x54] sm:$0xf]
    %v373 = vld [vmem:[%s3 + $0x58] sm:$0xf]
    %v374 = vld [vmem:[%s3 + $0x5c] sm:$0xf]
    %v375 = vld [vmem:[%s3 + $0x60] sm:$0xf]
    %v376 = vld [vmem:[%s3 + $0x64] sm:$0xf]
    %v377 = vld [vmem:[%s3 + $0x68] sm:$0xf]
    %v378 = vld [vmem:[%s3 + $0x6c] sm:$0xf]
    %v379 = vld [vmem:[%s3 + $0x70] sm:$0xf]
    %v380 = vld [vmem:[%s3 + $0x74] sm:$0xf]
    %v381 = vld [vmem:[%s3 + $0x78] sm:$0xf]
    %v382 = vld [vmem:[%s3 + $0x7c] sm:$0xf]
    %v383 = vpack.c.bf16 %v336, %v335
    %v384 = vpack.c.bf16 %v338, %v337
    %v385 = vpack.c.bf16 %v340, %v339
    %v386 = vpack.c.bf16 %v342, %v341
    %v387 = vpack.c.bf16 %v344, %v343
    %v388 = vpack.c.bf16 %v346, %v345
    %v389 = vpack.c.bf16 %v348, %v347
    %v390 = vpack.c.bf16 %v350, %v349
    %v391 = vld [vmem:[%s4] sm:$0xff]
    %v392 = vld [vmem:[%s4 + $0x8] sm:$0xff]
    %v393 = vld [vmem:[%s4 + $0x10] sm:$0xff]
    %v394 = vld [vmem:[%s4 + $0x18] sm:$0xff]
    %v395 = vld [vmem:[%s4 + $0x20] sm:$0xff]
    %v396 = vld [vmem:[%s4 + $0x28] sm:$0xff]
    %v397 = vld [vmem:[%s4 + $0x30] sm:$0xff]
    %v398 = vld [vmem:[%s4 + $0x38] sm:$0xff]
    %v399 = vld [vmem:[%s4 + $0x40] sm:$0xff]
    %v400 = vld [vmem:[%s4 + $0x48] sm:$0xff]
    %v401 = vld [vmem:[%s4 + $0x50] sm:$0xff]
    %v402 = vld [vmem:[%s4 + $0x58] sm:$0xff]
    %v403 = vld [vmem:[%s4 + $0x60] sm:$0xff]
    %v404 = vld [vmem:[%s4 + $0x68] sm:$0xff]
    %v405 = vld [vmem:[%s4 + $0x70] sm:$0xff]
    %v406 = vld [vmem:[%s4 + $0x78] sm:$0xff]
    %v407 = vld [vmem:[%s4 + $0x80] sm:$0xff]
    %v408 = vld [vmem:[%s4 + $0x88] sm:$0xff]
    %v409 = vld [vmem:[%s4 + $0x90] sm:$0xff]
    %v410 = vld [vmem:[%s4 + $0x98] sm:$0xff]
    %v411 = vld [vmem:[%s4 + $0xa0] sm:$0xff]
    %v412 = vld [vmem:[%s4 + $0xa8] sm:$0xff]
    %v413 = vld [vmem:[%s4 + $0xb0] sm:$0xff]
    %v414 = vld [vmem:[%s4 + $0xb8] sm:$0xff]
    %v415 = vld [vmem:[%s4 + $0xc0] sm:$0xff]
    %v416 = vld [vmem:[%s4 + $0xc8] sm:$0xff]
    %v417 = vld [vmem:[%s4 + $0xd0] sm:$0xff]
    %v418 = vld [vmem:[%s4 + $0xd8] sm:$0xff]
    %v419 = vld [vmem:[%s4 + $0xe0] sm:$0xff]
    %v420 = vld [vmem:[%s4 + $0xe8] sm:$0xff]
    %v421 = vld [vmem:[%s4 + $0xf0] sm:$0xff]
    %v422 = vld [vmem:[%s4 + $0xf8] sm:$0xff]
    %424 = vset.pattern.permute.xlu0 0
    %425 = vperm.xlu0 %424, %v391
    %v426 = vpop.permute.xlu0 %425
    %429 = vset.pattern.permute.xlu0 0
    %430 = vperm.xlu0 %429, %v392
    %v431 = vpop.permute.xlu0 %430
    %434 = vset.pattern.permute.xlu0 0
    %435 = vperm.xlu0 %434, %v393
    %v436 = vpop.permute.xlu0 %435
    %439 = vset.pattern.permute.xlu0 0
    %440 = vperm.xlu0 %439, %v394
    %v441 = vpop.permute.xlu0 %440
    %444 = vset.pattern.permute.xlu0 0
    %445 = vperm.xlu0 %444, %v395
    %v446 = vpop.permute.xlu0 %445
    %449 = vset.pattern.permute.xlu0 0
    %450 = vperm.xlu0 %449, %v396
    %v451 = vpop.permute.xlu0 %450
    %454 = vset.pattern.permute.xlu0 0
    %455 = vperm.xlu0 %454, %v397
    %v456 = vpop.permute.xlu0 %455
    %459 = vset.pattern.permute.xlu0 0
    %460 = vperm.xlu0 %459, %v398
    %v461 = vpop.permute.xlu0 %460
    %464 = vset.pattern.permute.xlu0 0
    %465 = vperm.xlu0 %464, %v399
    %v466 = vpop.permute.xlu0 %465
    %469 = vset.pattern.permute.xlu0 0
    %470 = vperm.xlu0 %469, %v400
    %v471 = vpop.permute.xlu0 %470
    %474 = vset.pattern.permute.xlu0 0
    %475 = vperm.xlu0 %474, %v401
    %v476 = vpop.permute.xlu0 %475
    %479 = vset.pattern.permute.xlu0 0
    %480 = vperm.xlu0 %479, %v402
    %v481 = vpop.permute.xlu0 %480
    %484 = vset.pattern.permute.xlu0 0
    %485 = vperm.xlu0 %484, %v403
    %v486 = vpop.permute.xlu0 %485
    %489 = vset.pattern.permute.xlu0 0
    %490 = vperm.xlu0 %489, %v404
    %v491 = vpop.permute.xlu0 %490
    %494 = vset.pattern.permute.xlu0 0
    %495 = vperm.xlu0 %494, %v405
    %v496 = vpop.permute.xlu0 %495
    %499 = vset.pattern.permute.xlu0 0
    %500 = vperm.xlu0 %499, %v406
    %v501 = vpop.permute.xlu0 %500
    %504 = vset.pattern.permute.xlu0 0
    %505 = vperm.xlu0 %504, %v407
    %v506 = vpop.permute.xlu0 %505
    %509 = vset.pattern.permute.xlu0 0
    %510 = vperm.xlu0 %509, %v408
    %v511 = vpop.permute.xlu0 %510
    %514 = vset.pattern.permute.xlu0 0
    %515 = vperm.xlu0 %514, %v409
    %v516 = vpop.permute.xlu0 %515
    %519 = vset.pattern.permute.xlu0 0
    %520 = vperm.xlu0 %519, %v410
    %v521 = vpop.permute.xlu0 %520
    %524 = vset.pattern.permute.xlu0 0
    %525 = vperm.xlu0 %524, %v411
    %v526 = vpop.permute.xlu0 %525
    %529 = vset.pattern.permute.xlu0 0
    %530 = vperm.xlu0 %529, %v412
    %v531 = vpop.permute.xlu0 %530
    %534 = vset.pattern.permute.xlu0 0
    %535 = vperm.xlu0 %534, %v413
    %v536 = vpop.permute.xlu0 %535
    %539 = vset.pattern.permute.xlu0 0
    %540 = vperm.xlu0 %539, %v414
    %v541 = vpop.permute.xlu0 %540
    %544 = vset.pattern.permute.xlu0 0
    %545 = vperm.xlu0 %544, %v415
    %v546 = vpop.permute.xlu0 %545
    %549 = vset.pattern.permute.xlu0 0
    %550 = vperm.xlu0 %549, %v416
    %v551 = vpop.permute.xlu0 %550
    %554 = vset.pattern.permute.xlu0 0
    %555 = vperm.xlu0 %554, %v417
    %v556 = vpop.permute.xlu0 %555
    %559 = vset.pattern.permute.xlu0 0
    %560 = vperm.xlu0 %559, %v418
    %v561 = vpop.permute.xlu0 %560
    %564 = vset.pattern.permute.xlu0 0
    %565 = vperm.xlu0 %564, %v419
    %v566 = vpop.permute.xlu0 %565
    %569 = vset.pattern.permute.xlu0 0
    %570 = vperm.xlu0 %569, %v420
    %v571 = vpop.permute.xlu0 %570
    %574 = vset.pattern.permute.xlu0 0
    %575 = vperm.xlu0 %574, %v421
    %v576 = vpop.permute.xlu0 %575
    %579 = vset.pattern.permute.xlu0 0
    %580 = vperm.xlu0 %579, %v422
    %v581 = vpop.permute.xlu0 %580
    %v615 = vunpack.c.l.b16 %v351
    %v616 = vunpack.c.l.b16 %v352
    %v617 = vunpack.c.l.b16 %v353
    %v618 = vunpack.c.l.b16 %v354
    %v619 = vunpack.c.l.b16 %v355
    %v620 = vunpack.c.l.b16 %v356
    %v621 = vunpack.c.l.b16 %v357
    %v622 = vunpack.c.l.b16 %v358
    %v623 = vunpack.c.l.b16 %v359
    %v624 = vunpack.c.l.b16 %v360
    %v625 = vunpack.c.l.b16 %v361
    %v626 = vunpack.c.l.b16 %v362
    %v627 = vunpack.c.l.b16 %v363
    %v628 = vunpack.c.l.b16 %v364
    %v629 = vunpack.c.l.b16 %v365
    %v630 = vunpack.c.l.b16 %v366
    %v631 = vunpack.c.l.b16 %v367
    %v632 = vunpack.c.l.b16 %v368
    %v633 = vunpack.c.l.b16 %v369
    %v634 = vunpack.c.l.b16 %v370
    %v635 = vunpack.c.l.b16 %v371
    %v636 = vunpack.c.l.b16 %v372
    %v637 = vunpack.c.l.b16 %v373
    %v638 = vunpack.c.l.b16 %v374
    %v639 = vunpack.c.l.b16 %v375
    %v640 = vunpack.c.l.b16 %v376
    %v641 = vunpack.c.l.b16 %v377
    %v642 = vunpack.c.l.b16 %v378
    %v643 = vunpack.c.l.b16 %v379
    %v644 = vunpack.c.l.b16 %v380
    %v645 = vunpack.c.l.b16 %v381
    %v646 = vunpack.c.l.b16 %v382
    %v647 = vpack.c.b16 %v616, %v615
    %v648 = vpack.c.b16 %v618, %v617
    %v649 = vpack.c.b16 %v620, %v619
    %v650 = vpack.c.b16 %v622, %v621
    %v651 = vpack.c.b16 %v624, %v623
    %v652 = vpack.c.b16 %v626, %v625
    %v653 = vpack.c.b16 %v628, %v627
    %v654 = vpack.c.b16 %v630, %v629
    %v655 = vpack.c.b16 %v632, %v631
    %v656 = vpack.c.b16 %v634, %v633
    %v657 = vpack.c.b16 %v636, %v635
    %v658 = vpack.c.b16 %v638, %v637
    %v659 = vpack.c.b16 %v640, %v639
    %v660 = vpack.c.b16 %v642, %v641
    %v661 = vpack.c.b16 %v644, %v643
    %v662 = vpack.c.b16 %v646, %v645
    %679 = vmatprep.subr.bf16.mxu0 0
    %680 = vmatpush1.bf16.msra.mxu0 %v390
    %681 = vmatprep.subr.bf16.mxu0 0
    %682 = vmatpush1.bf16.msra.mxu0 %v389
    %683 = vmatprep.subr.bf16.mxu0 0
    %684 = vmatpush1.bf16.msra.mxu0 %v388
    %685 = vmatprep.subr.bf16.mxu0 0
    %686 = vmatpush1.bf16.msra.mxu0 %v387
    %687 = vmatprep.subr.bf16.mxu0 0
    %688 = vmatpush1.bf16.msra.mxu0 %v386
    %689 = vmatprep.subr.bf16.mxu0 0
    %690 = vmatpush1.bf16.msra.mxu0 %v385
    %691 = vmatprep.subr.bf16.mxu0 0
    %692 = vmatpush1.bf16.msra.mxu0 %v384
    %693 = vmatprep.subr.bf16.mxu0 0
    %694 = vmatpush1.bf16.msra.mxu0 %v383
    %695 = vmatprep.subr.bf16.mxu0 0
    %696 = vmatpush2.bf16.msra.mxu0 0
    %697 = vmatprep.subr.bf16.mxu0 0
    %698 = vmatpush2.bf16.msra.mxu0 0
    %699 = vmatprep.subr.bf16.mxu0 0
    %700 = vmatpush2.bf16.msra.mxu0 0
    %701 = vmatprep.subr.bf16.mxu0 0
    %702 = vmatpush2.bf16.msra.mxu0 0
    %703 = vmatprep.subr.bf16.mxu0 0
    %704 = vmatpush2.bf16.msra.mxu0 0
    %705 = vmatprep.subr.bf16.mxu0 0
    %706 = vmatpush2.bf16.msra.mxu0 0
    %707 = vmatprep.subr.bf16.mxu0 0
    %708 = vmatpush2.bf16.msra.mxu0 0
    %709 = vmatprep.subr.bf16.mxu0 0
    %710 = vmatpush2.bf16.msra.mxu0 0
    %711 = vmatprep.mubr.bf16.mxu0 0
    %712 = vmatmul.mubr.bf16.gmra.mxu0 %v647
    %v713 = vpop.f32.mrf.mxu0
    %v714 = vadd.f32 %v426, %v713
    %v715 = vpop.f32.mrf.mxu0
    %v716 = vpop.f32.mrf.mxu0
    %v717 = vadd.f32 %v431, %v716
    %v718 = vpop.f32.mrf.mxu0
    %719 = vmatprep.mubr.bf16.mxu0 0
    %720 = vmatmul.mubr.bf16.gmra.mxu0 %v648
    %v721 = vpop.f32.mrf.mxu0
    %v722 = vadd.f32 %v436, %v721
    %v723 = vpop.f32.mrf.mxu0
    %v724 = vpop.f32.mrf.mxu0
    %v725 = vadd.f32 %v441, %v724
    %v726 = vpop.f32.mrf.mxu0
    %727 = vmatprep.mubr.bf16.mxu0 0
    %728 = vmatmul.mubr.bf16.gmra.mxu0 %v649
    %v729 = vpop.f32.mrf.mxu0
    %v730 = vadd.f32 %v446, %v729
    %v731 = vpop.f32.mrf.mxu0
    %v732 = vpop.f32.mrf.mxu0
    %v733 = vadd.f32 %v451, %v732
    %v734 = vpop.f32.mrf.mxu0
    %735 = vmatprep.mubr.bf16.mxu0 0
    %736 = vmatmul.mubr.bf16.gmra.mxu0 %v650
    %v737 = vpop.f32.mrf.mxu0
    %v738 = vadd.f32 %v456, %v737
    %v739 = vpop.f32.mrf.mxu0
    %v740 = vpop.f32.mrf.mxu0
    %v741 = vadd.f32 %v461, %v740
    %v742 = vpop.f32.mrf.mxu0
    %743 = vmatprep.mubr.bf16.mxu0 0
    %744 = vmatmul.mubr.bf16.gmra.mxu0 %v651
    %v745 = vpop.f32.mrf.mxu0
    %v746 = vadd.f32 %v466, %v745
    %v747 = vpop.f32.mrf.mxu0
    %v748 = vpop.f32.mrf.mxu0
    %v749 = vadd.f32 %v471, %v748
    %v750 = vpop.f32.mrf.mxu0
    %751 = vmatprep.mubr.bf16.mxu0 0
    %752 = vmatmul.mubr.bf16.gmra.mxu0 %v652
    %v753 = vpop.f32.mrf.mxu0
    %v754 = vadd.f32 %v476, %v753
    %v755 = vpop.f32.mrf.mxu0
    %v756 = vpop.f32.mrf.mxu0
    %v757 = vadd.f32 %v481, %v756
    %v758 = vpop.f32.mrf.mxu0
    %759 = vmatprep.mubr.bf16.mxu0 0
    %760 = vmatmul.mubr.bf16.gmra.mxu0 %v653
    %v761 = vpop.f32.mrf.mxu0
    %v762 = vadd.f32 %v486, %v761
    %v763 = vpop.f32.mrf.mxu0
    %v764 = vpop.f32.mrf.mxu0
    %v765 = vadd.f32 %v491, %v764
    %v766 = vpop.f32.mrf.mxu0
    %767 = vmatprep.mubr.bf16.mxu0 0
    %768 = vmatmul.mubr.bf16.gmra.mxu0 %v654
    %v769 = vpop.f32.mrf.mxu0
    %v770 = vadd.f32 %v496, %v769
    %v771 = vpop.f32.mrf.mxu0
    %v772 = vpop.f32.mrf.mxu0
    %v773 = vadd.f32 %v501, %v772
    %v774 = vpop.f32.mrf.mxu0
    %775 = vmatprep.mubr.bf16.mxu0 0
    %776 = vmatmul.mubr.bf16.gmra.mxu0 %v655
    %v777 = vpop.f32.mrf.mxu0
    %v778 = vadd.f32 %v506, %v777
    %v779 = vpop.f32.mrf.mxu0
    %v780 = vpop.f32.mrf.mxu0
    %v781 = vadd.f32 %v511, %v780
    %v782 = vpop.f32.mrf.mxu0
    %783 = vmatprep.mubr.bf16.mxu0 0
    %784 = vmatmul.mubr.bf16.gmra.mxu0 %v656
    %v785 = vpop.f32.mrf.mxu0
    %v786 = vadd.f32 %v516, %v785
    %v787 = vpop.f32.mrf.mxu0
    %v788 = vpop.f32.mrf.mxu0
    %v789 = vadd.f32 %v521, %v788
    %v790 = vpop.f32.mrf.mxu0
    %791 = vmatprep.mubr.bf16.mxu0 0
    %792 = vmatmul.mubr.bf16.gmra.mxu0 %v657
    %v793 = vpop.f32.mrf.mxu0
    %v794 = vadd.f32 %v526, %v793
    %v795 = vpop.f32.mrf.mxu0
    %v796 = vpop.f32.mrf.mxu0
    %v797 = vadd.f32 %v531, %v796
    %v798 = vpop.f32.mrf.mxu0
    %799 = vmatprep.mubr.bf16.mxu0 0
    %800 = vmatmul.mubr.bf16.gmra.mxu0 %v658
    %v801 = vpop.f32.mrf.mxu0
    %v802 = vadd.f32 %v536, %v801
    %v803 = vpop.f32.mrf.mxu0
    %v804 = vpop.f32.mrf.mxu0
    %v805 = vadd.f32 %v541, %v804
    %v806 = vpop.f32.mrf.mxu0
    %807 = vmatprep.mubr.bf16.mxu0 0
    %808 = vmatmul.mubr.bf16.gmra.mxu0 %v659
    %v809 = vpop.f32.mrf.mxu0
    %v810 = vadd.f32 %v546, %v809
    %v811 = vpop.f32.mrf.mxu0
    %v812 = vpop.f32.mrf.mxu0
    %v813 = vadd.f32 %v551, %v812
    %v814 = vpop.f32.mrf.mxu0
    %815 = vmatprep.mubr.bf16.mxu0 0
    %816 = vmatmul.mubr.bf16.gmra.mxu0 %v660
    %v817 = vpop.f32.mrf.mxu0
    %v818 = vadd.f32 %v556, %v817
    %v819 = vpop.f32.mrf.mxu0
    %v820 = vpop.f32.mrf.mxu0
    %v821 = vadd.f32 %v561, %v820
    %v822 = vpop.f32.mrf.mxu0
    %823 = vmatprep.mubr.bf16.mxu0 0
    %824 = vmatmul.mubr.bf16.gmra.mxu0 %v661
    %v825 = vpop.f32.mrf.mxu0
    %v826 = vadd.f32 %v566, %v825
    %v827 = vpop.f32.mrf.mxu0
    %v828 = vpop.f32.mrf.mxu0
    %v829 = vadd.f32 %v571, %v828
    %v830 = vpop.f32.mrf.mxu0
    %831 = vmatprep.mubr.bf16.mxu0 0
    %832 = vmatmul.mubr.bf16.gmra.mxu0 %v662
    %v833 = vpop.f32.mrf.mxu0
    %v834 = vadd.f32 %v576, %v833
    %v835 = vpop.f32.mrf.mxu0
    %v836 = vpop.f32.mrf.mxu0
    %v837 = vadd.f32 %v581, %v836
    %v838 = vpop.f32.mrf.mxu0
    %839 = vdwg.mxu0
    %v840 = vmax.f32 %v714, 0.0
    %v841 = vmax.f32 %v717, 0.0
    %v842 = vmax.f32 %v722, 0.0
    %v843 = vmax.f32 %v725, 0.0
    %v844 = vmax.f32 %v730, 0.0
    %v845 = vmax.f32 %v733, 0.0
    %v846 = vmax.f32 %v738, 0.0
    %v847 = vmax.f32 %v741, 0.0
    %v848 = vmax.f32 %v746, 0.0
    %v849 = vmax.f32 %v749, 0.0
    %v850 = vmax.f32 %v754, 0.0
    %v851 = vmax.f32 %v757, 0.0
    %v852 = vmax.f32 %v762, 0.0
    %v853 = vmax.f32 %v765, 0.0
    %v854 = vmax.f32 %v770, 0.0
    %v855 = vmax.f32 %v773, 0.0
    %v856 = vmax.f32 %v778, 0.0
    %v857 = vmax.f32 %v781, 0.0
    %v858 = vmax.f32 %v786, 0.0
    %v859 = vmax.f32 %v789, 0.0
    %v860 = vmax.f32 %v794, 0.0
    %v861 = vmax.f32 %v797, 0.0
    %v862 = vmax.f32 %v802, 0.0
    %v863 = vmax.f32 %v805, 0.0
    %v864 = vmax.f32 %v810, 0.0
    %v865 = vmax.f32 %v813, 0.0
    %v866 = vmax.f32 %v818, 0.0
    %v867 = vmax.f32 %v821, 0.0
    %v868 = vmax.f32 %v826, 0.0
    %v869 = vmax.f32 %v829, 0.0
    %v870 = vmax.f32 %v834, 0.0
    %v871 = vmax.f32 %v837, 0.0
    %v872 = vld [vmem:[%s5] sm:$0x3]
    %v873 = vpack.c.bf16 %v841, %v840
    %v874 = vpack.c.bf16 %v843, %v842
    %v875 = vpack.c.bf16 %v845, %v844
    %v876 = vpack.c.bf16 %v847, %v846
    %v877 = vpack.c.bf16 %v849, %v848
    %v878 = vpack.c.bf16 %v851, %v850
    %v879 = vpack.c.bf16 %v853, %v852
    %v880 = vpack.c.bf16 %v855, %v854
    %v881 = vpack.c.bf16 %v857, %v856
    %v882 = vpack.c.bf16 %v859, %v858
    %v883 = vpack.c.bf16 %v861, %v860
    %v884 = vpack.c.bf16 %v863, %v862
    %v885 = vpack.c.bf16 %v865, %v864
    %v886 = vpack.c.bf16 %v867, %v866
    %v887 = vpack.c.bf16 %v869, %v868
    %v888 = vpack.c.bf16 %v871, %v870
    %v889 = vld [vmem:[%s6] sm:$0x3]
    %891 = vset.pattern.permute.xlu0 0
    %892 = vperm.xlu0 %891, %v889
    %v893 = vpop.permute.xlu0 %892
    %v897 = vunpack.c.l.s4 1966171168
    %v898 = vunpack.c.0.s8 %v897
    %v899 = vlaneseq
    %v900 = vshrl.u32 %v899, 7
    %v901 = vsub.s32 %v898, %v900
    %v902 = vrot.slane %v872, %v901
    %v903 = vcombine.high %v902, %v902
    %v905 = vunpack.c.l.s4 1966171168
    %v906 = vunpack.c.0.s8 %v905
    %v907 = vlaneseq
    %v908 = vshrl.u32 %v907, 7
    %v909 = vsub.s32 %v906, %v908
    %v910 = vrot.slane %v902, %v909
    %v912 = vunpack.c.l.s4 1966171168
    %v913 = vunpack.c.0.s8 %v912
    %v914 = vlaneseq
    %v915 = vshrl.u32 %v914, 7
    %v916 = vsub.s32 %v913, %v915
    %v917 = vrot.slane %v903, %v916
    %920 = vmatprep.subr.bf16.mxu0 0
    %921 = vmatpush1.bf16.msra.mxu0 %v880
    %922 = vmatprep.subr.bf16.mxu0 0
    %923 = vmatpush1.bf16.msra.mxu0 %v879
    %924 = vmatprep.subr.bf16.mxu0 0
    %925 = vmatpush1.bf16.msra.mxu0 %v878
    %926 = vmatprep.subr.bf16.mxu0 0
    %927 = vmatpush1.bf16.msra.mxu0 %v877
    %928 = vmatprep.subr.bf16.mxu0 0
    %929 = vmatpush1.bf16.msra.mxu0 %v876
    %930 = vmatprep.subr.bf16.mxu0 0
    %931 = vmatpush1.bf16.msra.mxu0 %v875
    %932 = vmatprep.subr.bf16.mxu0 0
    %933 = vmatpush1.bf16.msra.mxu0 %v874
    %934 = vmatprep.subr.bf16.mxu0 0
    %935 = vmatpush1.bf16.msra.mxu0 %v873
    %936 = vmatprep.subr.bf16.mxu0 0
    %937 = vmatpush2.bf16.msra.mxu0 %v888
    %938 = vmatprep.subr.bf16.mxu0 0
    %939 = vmatpush2.bf16.msra.mxu0 %v887
    %940 = vmatprep.subr.bf16.mxu0 0
    %941 = vmatpush2.bf16.msra.mxu0 %v886
    %942 = vmatprep.subr.bf16.mxu0 0
    %943 = vmatpush2.bf16.msra.mxu0 %v885
    %944 = vmatprep.subr.bf16.mxu0 0
    %945 = vmatpush2.bf16.msra.mxu0 %v884
    %946 = vmatprep.subr.bf16.mxu0 0
    %947 = vmatpush2.bf16.msra.mxu0 %v883
    %948 = vmatprep.subr.bf16.mxu0 0
    %949 = vmatpush2.bf16.msra.mxu0 %v882
    %950 = vmatprep.subr.bf16.mxu0 0
    %951 = vmatpush2.bf16.msra.mxu0 %v881
    %952 = vmatprep.mubr.bf16.mxu0 %v917
    %953 = vmatmul.mubr.bf16.gmra.mxu0 %v910
    %v954 = vpop.f32.mrf.mxu0
    %v955 = vadd.f32 %v893, %v954
    %v956 = vpop.f32.mrf.mxu0
    %v957 = vpop.f32.mrf.mxu0
    %v958 = vpop.f32.mrf.mxu0
    %959 = vdwg.mxu0
    %v960 = vmax.f32 %v955, 0.0
    %v962 = vrot.slane %v960, 1
    %v964 = vmax.f32 %v960, %v962
    %v965 = vsub.f32 %v960, %v964
    %v966 = vmul.f32 %v965, 1.442695
    %v967 = vpow.pop %v966
    %v969 = vrot.slane %v964, 7
    %v971 = vsub.f32 %v960, %v969
    %v972 = vmul.f32 %v971, 1.442695
    %v973 = vpow.pop %v972
    %v975 = vrot.slane %v973, 1
    %v977 = vadd.f32 %v967, %v975
    %v978 = vrcp.pop %v977
    %v979 = vmul.f32 %v967, %v978
    %980 = vst [vmem:[#allocation2] sm:$0x1] %v979
    %v982 = vrot.slane %v978, 7
    %v984 = vmul.f32 %v973, %v982
    %985 = vst [vmem:[#allocation2] sm:$0x2] %v984
    // Predicated region
    $region30: #{tpu_custom_call.1} parent=1 // pred_check
      _
    $region31: #{tpu_custom_call.1} parent=1 // pred_check_branch
      %987 = sbr.rel (0) target = $region33
    $region32: #{tpu_custom_call.1} parent=1 // pred_region
      %s989 = ssub.s32 32, 32
      %990 = vsyncadd [#allocation3], %s989
      %s992 = sshll.u32 [#allocation2], 4
      %s993 = int_to_ptr.vmem [resolvable:$true] %s992
      %995 = dma.vmem_to_hbm [thread:$0]  %s993, 32, %s7, [#allocation3]
    $region33: #{tpu_custom_call.1} parent=1 // pred_fallthru
      _
    // Predicated region
    $region34: #{tpu_custom_call.1} parent=1 // pred_check
      _
    $region35: #{tpu_custom_call.1} parent=1 // pred_check_branch
      %997 = sbr.rel (0) target = $region37
    $region36: #{tpu_custom_call.1} parent=1 // pred_region
      %998 = dma.done [#allocation3], 32
    $region37: #{tpu_custom_call.1} parent=1 // pred_fallthru
      _
    %999 = vsyncpa [#allocation3], 1

</llo_original>
